<compile_context>
chip_gen: v5e
topology: v5e:2x2
jax: 0.10.0
libtpu: 0.0.40
codegen_flags: <defaults>
</compile_context>

<pallas_src>
import functools
import math
import warnings

import jax
import jax.numpy as jnp
from jax.experimental import pallas as pl
from jax.experimental.pallas import tpu as pltpu


def _round_up(x, m):
    return ((x + m - 1) // m) * m


# ----------------------------------------------------------------------------
# Kernel
# ----------------------------------------------------------------------------
def _fused_readout_kernel(x_ref, w1_ref, b1_ref, w2_ref, b2_ref, o_ref,
                          *, chunk, n_chunks):
    # x_ref:  [tm_pk, pack*D]        tile of packed atoms (pack atoms per row)
    # w1_ref: [pack*D, pack*P*D]     kron(I_pack, concat_p W1_p)    (resident)
    # b1_ref: [1, pack*P*D]          tiled layer-1 bias             (resident)
    # w2_ref: [pack*P*D, pack*P]     kron(I_pack, blockdiag_p W2_p) (resident)
    # b2_ref: [1, pack*P]            tiled layer-2 bias             (resident)
    # o_ref:  [tm_pk, pack*P]
    w1 = w1_ref[...]
    b1 = b1_ref[...]
    w2 = w2_ref[...]
    b2 = b2_ref[...]

    def body(c, carry):
        r0 = pl.multiple_of(c * chunk, chunk)
        xb = x_ref[pl.ds(r0, chunk), :]
        h = jnp.dot(xb, w1, preferred_element_type=jnp.float32) + b1
        h = h * jax.nn.sigmoid(h)                      # SiLU in f32 (v5e-safe)
        y = jnp.dot(h, w2, preferred_element_type=jnp.float32) + b2
        o_ref[pl.ds(r0, chunk), :] = y.astype(o_ref.dtype)
        return carry

    # Short static trip-count; unroll for LLO scheduling visibility.
    jax.lax.fori_loop(0, n_chunks, body, 0, unroll=True)


# ----------------------------------------------------------------------------
# Wrapper: one pallas_call for all fused way==0 properties
# ----------------------------------------------------------------------------
@functools.partial(jax.jit, static_argnames=("tm", "chunk_rows"))
def fused_readout_pallas(x, w1_big, b1_big, w2_big, b2_big, *,
                         tm=16384, chunk_rows=512):
    """Fused ReadoutLinearMLP forward for P way==0 properties.

    x:      [N, D]               way-0 atomic features (f32 or bf16)
    w1_big: [pack*D, pack*P*D]   kron(I_pack, concat_p W1_p^T)
    b1_big: [1, pack*P*D]
    w2_big: [pack*P*D, pack*P]   kron(I_pack, blockdiag_p W2_p)
    b2_big: [1, pack*P]
    returns [N, P] float32
    """
    n, d = x.shape
    kd = w1_big.shape[0]          # pack * D
    pack = kd // d
    h_cols = w1_big.shape[1]      # pack * P * D
    pp = w2_big.shape[1]          # pack * P
    p = pp // pack

    # bf16 streaming only when x is already bf16 upstream; W1 is tiny/resident
    # so matching its dtype costs nothing.  Accumulation stays f32.
    w1_big = w1_big.astype(x.dtype)

    # Pad N only up to a multiple of align = pack*8 (keeps packed rows a
    # multiple of 8); the grid uses cdiv so the last block may be partial.
    align = pack * 8
    n_pad = _round_up(max(n, 1), align)
    if n_pad != n:
        x = jnp.pad(x, ((0, n_pad - n), (0, 0)))
    xp = x.reshape(n_pad // pack, kd)       # free contiguous reshape
    rows = n_pad // pack                    # multiple of 8

    # Row tile (in packed rows): large to amortize per-grid-step overhead, but
    # clamped so the grid keeps >= 2 steps (megacore) and never exceeds `rows`.
    tm_pk = _round_up(max(tm, align), align) // pack
    tm_pk = min(tm_pk, _round_up(pl.cdiv(rows, 2), 8))
    chunk = min(_round_up(max(chunk_rows, 8), 8), tm_pk)
    tm_pk = _round_up(tm_pk, chunk)
    if tm_pk > rows:                        # rare small-N edge: stay in-bounds
        tm_pk = rows
        chunk = math.gcd(chunk, tm_pk)
    n_chunks = tm_pk // chunk
    grid = (pl.cdiv(rows, tm_pk),)

    work_rows = grid[0] * tm_pk
    cost = pl.CostEstimate(
        flops=2 * work_rows * (kd * h_cols + h_cols * pp),
        transcendentals=work_rows * h_cols,
        bytes_accessed=(xp.size * xp.dtype.itemsize
                        + w1_big.size * w1_big.dtype.itemsize
                        + b1_big.size * b1_big.dtype.itemsize
                        + w2_big.size * w2_big.dtype.itemsize
                        + b2_big.size * b2_big.dtype.itemsize
                        + rows * pp * 4),
    )

    kernel = functools.partial(_fused_readout_kernel, chunk=chunk,
                               n_chunks=n_chunks)

    yp = pl.pallas_call(
        kernel,
        out_shape=jax.ShapeDtypeStruct((rows, pp), jnp.float32),
        grid_spec=pltpu.PrefetchScalarGridSpec(
            num_scalar_prefetch=0,
            grid=grid,
            in_specs=[
                pl.BlockSpec((tm_pk, kd), lambda i: (i, 0)),      # x tile
                pl.BlockSpec((kd, h_cols), lambda i: (0, 0)),     # W1 (resident)
                pl.BlockSpec((1, h_cols), lambda i: (0, 0)),      # b1 (resident)
                pl.BlockSpec((h_cols, pp), lambda i: (0, 0)),     # W2 (resident)
                pl.BlockSpec((1, pp), lambda i: (0, 0)),          # b2 (resident)
            ],
            out_specs=pl.BlockSpec((tm_pk, pp), lambda i: (i, 0)),
        ),
        compiler_params=pltpu.CompilerParams(
            dimension_semantics=("parallel",),
        ),
        cost_estimate=cost,
    )(xp, w1_big, b1_big, w2_big, b2_big)

    # Free reshape back to per-atom rows, drop padding.  b2 already added
    # in-kernel, so there is no extra HBM pass here.
    return yp.reshape(n_pad, p)[:n]


# ----------------------------------------------------------------------------
# Parameter handling (mirrors nn.Linear shapes; weights stored pre-transposed)
# ----------------------------------------------------------------------------
def init_readout_params(key, n_dim, target_way):
    """layer1: Linear(n_dim, n_dim, bias=(way==0)); layer2: Linear(n_dim, 1, bias=(way==0)).

    Weights are stored pre-transposed ([in, out]) for the kernel's x @ W layout.
    """
    params = {}
    for prop, way in target_way.items():
        key, k1, k2, k3, k4 = jax.random.split(key, 5)
        lim = 1.0 / jnp.sqrt(n_dim)
        w1 = jax.random.uniform(k1, (n_dim, n_dim), jnp.float32, -lim, lim)
        w2 = jax.random.uniform(k2, (n_dim, 1), jnp.float32, -lim, lim)
        if way == 0:
            b1 = jax.random.uniform(k3, (n_dim,), jnp.float32, -lim, lim)
            b2 = jax.random.uniform(k4, (1,), jnp.float32, -lim, lim)
        else:
            b1 = jnp.zeros((n_dim,), jnp.float32)
            b2 = jnp.zeros((1,), jnp.float32)
        params[prop] = (w1, b1, w2, b2)
    return params


def build_fused_readout_params(params, target_way):
    """Hoisted precompute: concat / block-diag / kron-expand all way==0 heads.

    Done ONCE when params change, not inside the per-call jitted path.
    """
    props = list(target_way.keys())
    for prop, way in target_way.items():
        if way != 0:
            # TODO(synk): way>0 (equivariant, norm-gated) readout not implemented.
            raise NotImplementedError("only way==0 targets supported")
    d = params[props[0]][0].shape[0]
    n_props = len(props)

    if d <= 128 and 128 % d == 0:
        pack = 128 // d
    else:
        pack = 1
        warnings.warn(
            f"n_dim={d} does not divide 128; lane packing disabled "
            f"(lane utilization drops to {min(d, 128) / 128:.0%}).")

    w1_cat = jnp.concatenate([params[p][0] for p in props], axis=1)   # [D, P*D]
    b1_cat = jnp.concatenate([params[p][1] for p in props], axis=0)   # [P*D]
    w2_blk = jnp.zeros((n_props * d, n_props), w1_cat.dtype)          # [P*D, P]
    for i, prop in enumerate(props):
        w2_blk = w2_blk.at[i * d:(i + 1) * d, i].set(params[prop][2][:, 0])
    b2_cat = jnp.concatenate([params[p][3] for p in props], axis=0)   # [P]

    eye = jnp.eye(pack, dtype=w1_cat.dtype)
    return {
        "props": tuple(props),
        "w1_big": jnp.kron(eye, w1_cat),              # [pack*D, pack*P*D]
        "b1_big": jnp.tile(b1_cat, pack)[None, :],    # [1, pack*P*D]
        "w2_big": jnp.kron(eye, w2_blk),              # [pack*P*D, pack*P]
        "b2_big": jnp.tile(b2_cat, pack)[None, :],    # [1, pack*P]
    }


def readout_layer_forward(input_tensors, emb, fused_params, *, tm=16384,
                          chunk_rows=512):
    """ReadoutLayer.forward: Dict[int, Array], emb -> Dict[str, Array]."""
    del emb  # unused for the non-bilinear (ReadoutLinearMLP) path
    # TODO(synk): bilinear=True (TensorBiLinear with emb) is not implemented.
    y = fused_readout_pallas(
        input_tensors[0], fused_params["w1_big"], fused_params["b1_big"],
        fused_params["w2_big"], fused_params["b2_big"],
        tm=tm, chunk_rows=chunk_rows)                              # [N, P]
    return {prop: y[:, i] for i, prop in enumerate(fused_params["props"])}


# ----------------------------------------------------------------------------
# Pure-JAX reference & self-test
# ----------------------------------------------------------------------------
def _reference_forward(input_tensors, params, target_way):
    out = {}
    for prop, way in target_way.items():
        w1, b1, w2, b2 = params[prop]
        x = input_tensors[way].astype(jnp.float32)
        h = x @ w1 + b1
        h = h * jax.nn.sigmoid(h)
        out[prop] = jnp.squeeze(h @ w2 + b2, axis=1)
    return out


if __name__ == "__main__":
    n_dim, e_dim = 32, 8
    target_way = {"site_energy": 0, "site_charge": 0}   # two fused way==0 heads

    key = jax.random.PRNGKey(0)
    key, kp = jax.random.split(key)
    params = init_readout_params(kp, n_dim, target_way)
    fused = build_fused_readout_params(params, target_way)   # hoisted precompute

    # f32 correctness: tiny N (single partial tile, padded 23->32) and a
    # medium N (multiple grid steps + multiple in-kernel chunks + partial tile).
    for n_atoms in (23, 5003):
        key, kx, ke = jax.random.split(key, 3)
        x = jax.random.normal(kx, (n_atoms, n_dim), jnp.float32)
        emb = jax.random.normal(ke, (n_atoms, e_dim), jnp.float32)  # unused
        input_tensors = {0: x}

        out = readout_layer_forward(input_tensors, emb, fused)
        out = jax.tree_util.tree_map(jax.block_until_ready, out)
        ref = _reference_forward(input_tensors, params, target_way)
        for prop in target_way:
            assert out[prop].shape == (n_atoms,), (prop, out[prop].shape)
            assert jnp.allclose(out[prop], ref[prop], atol=1e-4, rtol=1e-4), prop

    # bf16 streaming path: only taken when x already arrives as bf16 (no
    # wrapper-side cast); validated against the reference with loose tolerance.
    key, kx = jax.random.split(key)
    x_bf16 = jax.random.normal(kx, (23, n_dim), jnp.float32).astype(jnp.bfloat16)
    out_bf = readout_layer_forward({0: x_bf16}, None, fused)
    out_bf = jax.tree_util.tree_map(jax.block_until_ready, out_bf)
    ref_bf = _reference_forward({0: x_bf16}, params, target_way)
    for prop in target_way:
        assert out_bf[prop].shape == (23,)
        assert jnp.allclose(out_bf[prop], ref_bf[prop], atol=5e-2, rtol=5e-2), prop

    print("KERNEL_OK")
</pallas_src>

<mosaic_0001>
module attributes {stable_mosaic.version = 11 : i64} {
  func.func @_fused_readout_kernel(%arg0: i32, %arg1: memref<8x128xf32, #tpu.memory_space<vmem>>, %arg2: memref<128x256xf32, #tpu.memory_space<vmem>>, %arg3: memref<1x256xf32, #tpu.memory_space<vmem>>, %arg4: memref<256x8xf32, #tpu.memory_space<vmem>>, %arg5: memref<1x8xf32, #tpu.memory_space<vmem>>, %arg6: memref<8x8xf32, #tpu.memory_space<vmem>>) attributes {dimension_semantics = [#tpu.dimension_semantics<parallel>], iteration_bounds = array<i64: 1>, scalar_prefetch = 0 : i64, scratch_operands = 0 : i64, tpu.core_type = #tpu.core_type<tc>, window_params = [{transform_indices = @transform_0, window_bounds = array<i64: 8, 128>}, {pipeline_mode = #tpu.pipeline_mode<synchronous>, transform_indices = @transform_1, window_bounds = array<i64: 128, 256>}, {pipeline_mode = #tpu.pipeline_mode<synchronous>, transform_indices = @transform_2, window_bounds = array<i64: 1, 256>}, {pipeline_mode = #tpu.pipeline_mode<synchronous>, transform_indices = @transform_3, window_bounds = array<i64: 256, 8>}, {pipeline_mode = #tpu.pipeline_mode<synchronous>, transform_indices = @transform_4, window_bounds = array<i64: 1, 8>}, {transform_indices = @transform_5, window_bounds = array<i64: 8, 8>}]} {
    %c0 = arith.constant 0 : index
    %c0_0 = arith.constant 0 : index
    %0 = vector.load %arg2[%c0, %c0_0] : memref<128x256xf32, #tpu.memory_space<vmem>>, vector<128x256xf32>
    %c0_1 = arith.constant 0 : index
    %c0_2 = arith.constant 0 : index
    %1 = vector.load %arg3[%c0_1, %c0_2] : memref<1x256xf32, #tpu.memory_space<vmem>>, vector<1x256xf32>
    %c0_3 = arith.constant 0 : index
    %c0_4 = arith.constant 0 : index
    %2 = vector.load %arg4[%c0_3, %c0_4] : memref<256x8xf32, #tpu.memory_space<vmem>>, vector<256x8xf32>
    %c0_5 = arith.constant 0 : index
    %c0_6 = arith.constant 0 : index
    %3 = vector.load %arg5[%c0_5, %c0_6] : memref<1x8xf32, #tpu.memory_space<vmem>>, vector<1x8xf32>
    %c0_i32 = arith.constant 0 : i32
    %c8_i32 = arith.constant 8 : i32
    %4 = arith.muli %c0_i32, %c8_i32 : i32
    %5 = tpu.assume_multiple %4, 8 : i32
    %6 = arith.index_cast %5 : i32 to index
    %c0_7 = arith.constant 0 : index
    %7 = vector.load %arg1[%6, %c0_7] : memref<8x128xf32, #tpu.memory_space<vmem>>, vector<8x128xf32>
    %cst = arith.constant dense<0.000000e+00> : vector<8x256xf32>
    %8 = tpu.matmul %7, %0, %cst {dimension_numbers = #tpu.dot_dimension_numbers<[1], [0], [0], [1], [0, 0, 1, 1], [], []>} : vector<8x128xf32>, vector<128x256xf32>, vector<8x256xf32> -> vector<8x256xf32>
    %9 = vector.broadcast %1 : vector<1x256xf32> to vector<8x256xf32>
    %10 = arith.addf %8, %9 : vector<8x256xf32>
    %11 = arith.negf %10 : vector<8x256xf32>
    %12 = math.exp %11 : vector<8x256xf32>
    %cst_8 = arith.constant 1.000000e+00 : f32
    %13 = vector.broadcast %cst_8 : f32 to vector<8x256xf32>
    %14 = arith.addf %13, %12 : vector<8x256xf32>
    %15 = arith.divf %13, %14 : vector<8x256xf32>
    %16 = arith.mulf %10, %15 : vector<8x256xf32>
    %cst_9 = arith.constant dense<0.000000e+00> : vector<8x8xf32>
    %17 = tpu.matmul %16, %2, %cst_9 {dimension_numbers = #tpu.dot_dimension_numbers<[1], [0], [0], [1], [0, 0, 1, 1], [], []>} : vector<8x256xf32>, vector<256x8xf32>, vector<8x8xf32> -> vector<8x8xf32>
    %18 = vector.broadcast %3 : vector<1x8xf32> to vector<8x8xf32>
    %19 = arith.addf %17, %18 : vector<8x8xf32>
    %20 = arith.index_cast %5 : i32 to index
    %c0_10 = arith.constant 0 : index
    %21 = vector.load %arg6[%20, %c0_10] : memref<8x8xf32, #tpu.memory_space<vmem>>, vector<8x8xf32>
    tpu.vector_store %arg6[%20, %c0_10], %19 {strides = array<i32>} : memref<8x8xf32, #tpu.memory_space<vmem>>, vector<8x8xf32>,
    %c1_i32 = arith.constant 1 : i32
    return
  }
  func.func @transform_0(%arg0: i32) -> (i32, i32) {
    %c0_i32 = arith.constant 0 : i32
    %c0_i32_0 = arith.constant 0 : i32
    return %arg0, %c0_i32 : i32, i32
  }
  func.func @transform_1(%arg0: i32) -> (i32, i32) {
    %c0_i32 = arith.constant 0 : i32
    %c0_i32_0 = arith.constant 0 : i32
    %c0_i32_1 = arith.constant 0 : i32
    return %c0_i32, %c0_i32_0 : i32, i32
  }
  func.func @transform_2(%arg0: i32) -> (i32, i32) {
    %c0_i32 = arith.constant 0 : i32
    %c0_i32_0 = arith.constant 0 : i32
    %c0_i32_1 = arith.constant 0 : i32
    return %c0_i32, %c0_i32_0 : i32, i32
  }
  func.func @transform_3(%arg0: i32) -> (i32, i32) {
    %c0_i32 = arith.constant 0 : i32
    %c0_i32_0 = arith.constant 0 : i32
    %c0_i32_1 = arith.constant 0 : i32
    return %c0_i32, %c0_i32_0 : i32, i32
  }
  func.func @transform_4(%arg0: i32) -> (i32, i32) {
    %c0_i32 = arith.constant 0 : i32
    %c0_i32_0 = arith.constant 0 : i32
    %c0_i32_1 = arith.constant 0 : i32
    return %c0_i32, %c0_i32_0 : i32, i32
  }
  func.func @transform_5(%arg0: i32) -> (i32, i32) {
    %c0_i32 = arith.constant 0 : i32
    %c0_i32_0 = arith.constant 0 : i32
    return %arg0, %c0_i32 : i32, i32
  }
}

</mosaic_0001>

<llo_original>
// kernel: fused_readout_pallas.1
$region0: #{fused_readout_pallas.1}
  #allocation0 [shape = 'u32[]', space=smem, size = 0x4, offset = 0x4, fixed_abs, tag = 'smem constant byte address 0x4 - core index']
  #allocation1 [shape = 'u32[72,128]{1,0:T(1,128)}', space=vmem, size = 0x9000, scoped, tag = 'internal scratch']
  %s0 = inlined_call_operand.vmem [shape: f32[8,128], index: 0, kind: input, shape index: {}]
  %s1 = inlined_call_operand.vmem [shape: f32[128,256], index: 1, kind: input, shape index: {}]
  %s2 = inlined_call_operand.vmem [shape: f32[1,256], index: 2, kind: input, shape index: {}]
  %s3 = inlined_call_operand.vmem [shape: f32[256,8], index: 3, kind: input, shape index: {}]
  %s4 = inlined_call_operand.vmem [shape: f32[1,8], index: 4, kind: input, shape index: {}]
  %s5 = inlined_call_operand.vmem [shape: f32[8,8], index: 5, kind: output, shape index: {}]
  %s6 = sld [smem:[#allocation0]]
  $region30: #{fused_readout_pallas.1} parent=0
    _
  %s8 = ssub.s32 1, %s6
  %s9 = scalar_select 0, %s8, %s6
  // Predicated region
  $region2: #{fused_readout_pallas.1} parent=0 // pred_check
    _
  $region3: #{fused_readout_pallas.1} parent=0 // pred_check_branch
    %11 = sbr.rel (0) target = $region5
  $region4: #{fused_readout_pallas.1} parent=0 // pred_region
    _
  $region5: #{fused_readout_pallas.1} parent=0 // pred_fallthru
    _
  // Predicated region
  $region6: #{fused_readout_pallas.1} parent=0 // pred_check
    _
  $region7: #{fused_readout_pallas.1} parent=0 // pred_check_branch
    %13 = sbr.rel (0) target = $region9
  $region8: #{fused_readout_pallas.1} parent=0 // pred_region
    _
  $region9: #{fused_readout_pallas.1} parent=0 // pred_fallthru
    _
  // Predicated region
  $region10: #{fused_readout_pallas.1} parent=0 // pred_check
    _
  $region11: #{fused_readout_pallas.1} parent=0 // pred_check_branch
    %15 = sbr.rel (0) target = $region13
  $region12: #{fused_readout_pallas.1} parent=0 // pred_region
    _
  $region13: #{fused_readout_pallas.1} parent=0 // pred_fallthru
    _
  // Predicated region
  $region14: #{fused_readout_pallas.1} parent=0 // pred_check
    _
  $region15: #{fused_readout_pallas.1} parent=0 // pred_check_branch
    %17 = sbr.rel (0) target = $region17
  $region16: #{fused_readout_pallas.1} parent=0 // pred_region
    _
  $region17: #{fused_readout_pallas.1} parent=0 // pred_fallthru
    _
  // Predicated region
  $region18: #{fused_readout_pallas.1} parent=0 // pred_check
    _
  $region19: #{fused_readout_pallas.1} parent=0 // pred_check_branch
    %19 = sbr.rel (0) target = $region21
  $region20: #{fused_readout_pallas.1} parent=0 // pred_region
    _
  $region21: #{fused_readout_pallas.1} parent=0 // pred_fallthru
    _
  %v20 = vld [vmem:[%s1] sm:$0xff]
  %v21 = vld [vmem:[%s1 + $0x8] sm:$0xff]
  %v22 = vld [vmem:[%s1 + $0x10] sm:$0xff]
  %v23 = vld [vmem:[%s1 + $0x18] sm:$0xff]
  %v24 = vld [vmem:[%s1 + $0x20] sm:$0xff]
  %v25 = vld [vmem:[%s1 + $0x28] sm:$0xff]
  %v26 = vld [vmem:[%s1 + $0x30] sm:$0xff]
  %v27 = vld [vmem:[%s1 + $0x38] sm:$0xff]
  %v28 = vld [vmem:[%s1 + $0x40] sm:$0xff]
  %v29 = vld [vmem:[%s1 + $0x48] sm:$0xff]
  %v30 = vld [vmem:[%s1 + $0x50] sm:$0xff]
  %v31 = vld [vmem:[%s1 + $0x58] sm:$0xff]
  %v32 = vld [vmem:[%s1 + $0x60] sm:$0xff]
  %v33 = vld [vmem:[%s1 + $0x68] sm:$0xff]
  %v34 = vld [vmem:[%s1 + $0x70] sm:$0xff]
  %v35 = vld [vmem:[%s1 + $0x78] sm:$0xff]
  %v36 = vld [vmem:[%s1 + $0x80] sm:$0xff]
  %v37 = vld [vmem:[%s1 + $0x88] sm:$0xff]
  %v38 = vld [vmem:[%s1 + $0x90] sm:$0xff]
  %v39 = vld [vmem:[%s1 + $0x98] sm:$0xff]
  %v40 = vld [vmem:[%s1 + $0xa0] sm:$0xff]
  %v41 = vld [vmem:[%s1 + $0xa8] sm:$0xff]
  %v42 = vld [vmem:[%s1 + $0xb0] sm:$0xff]
  %v43 = vld [vmem:[%s1 + $0xb8] sm:$0xff]
  %v44 = vld [vmem:[%s1 + $0xc0] sm:$0xff]
  %v45 = vld [vmem:[%s1 + $0xc8] sm:$0xff]
  %v46 = vld [vmem:[%s1 + $0xd0] sm:$0xff]
  %v47 = vld [vmem:[%s1 + $0xd8] sm:$0xff]
  %v48 = vld [vmem:[%s1 + $0xe0] sm:$0xff]
  %v49 = vld [vmem:[%s1 + $0xe8] sm:$0xff]
  %v50 = vld [vmem:[%s1 + $0xf0] sm:$0xff]
  %v51 = vld [vmem:[%s1 + $0xf8] sm:$0xff]
  %v52 = vld [vmem:[%s2] sm:$0x3]
  %v53 = vld [vmem:[%s3] sm:$0xff]
  %v54 = vld [vmem:[%s3 + $0x8] sm:$0xff]
  %v55 = vld [vmem:[%s3 + $0x10] sm:$0xff]
  %v56 = vld [vmem:[%s3 + $0x18] sm:$0xff]
  %v57 = vld [vmem:[%s3 + $0x20] sm:$0xff]
  %v58 = vld [vmem:[%s3 + $0x28] sm:$0xff]
  %v59 = vld [vmem:[%s3 + $0x30] sm:$0xff]
  %v60 = vld [vmem:[%s3 + $0x38] sm:$0xff]
  %v61 = vld [vmem:[%s3 + $0x40] sm:$0xff]
  %v62 = vld [vmem:[%s3 + $0x48] sm:$0xff]
  %v63 = vld [vmem:[%s3 + $0x50] sm:$0xff]
  %v64 = vld [vmem:[%s3 + $0x58] sm:$0xff]
  %v65 = vld [vmem:[%s3 + $0x60] sm:$0xff]
  %v66 = vld [vmem:[%s3 + $0x68] sm:$0xff]
  %v67 = vld [vmem:[%s3 + $0x70] sm:$0xff]
  %v68 = vld [vmem:[%s3 + $0x78] sm:$0xff]
  %v69 = vld [vmem:[%s3 + $0x80] sm:$0xff]
  %v70 = vld [vmem:[%s3 + $0x88] sm:$0xff]
  %v71 = vld [vmem:[%s3 + $0x90] sm:$0xff]
  %v72 = vld [vmem:[%s3 + $0x98] sm:$0xff]
  %v73 = vld [vmem:[%s3 + $0xa0] sm:$0xff]
  %v74 = vld [vmem:[%s3 + $0xa8] sm:$0xff]
  %v75 = vld [vmem:[%s3 + $0xb0] sm:$0xff]
  %v76 = vld [vmem:[%s3 + $0xb8] sm:$0xff]
  %v77 = vld [vmem:[%s3 + $0xc0] sm:$0xff]
  %v78 = vld [vmem:[%s3 + $0xc8] sm:$0xff]
  %v79 = vld [vmem:[%s3 + $0xd0] sm:$0xff]
  %v80 = vld [vmem:[%s3 + $0xd8] sm:$0xff]
  %v81 = vld [vmem:[%s3 + $0xe0] sm:$0xff]
  %v82 = vld [vmem:[%s3 + $0xe8] sm:$0xff]
  %v83 = vld [vmem:[%s3 + $0xf0] sm:$0xff]
  %v84 = vld [vmem:[%s3 + $0xf8] sm:$0xff]
  %v85 = vld [vmem:[%s4] sm:$0x1]
  %v86 = vld [vmem:[%s0] sm:$0xff]
  %v88 = vperm.slane %v52, 0
  %v89 = vperm.slane %v52, 1
  %92 = vmatpush.msra.mxu0 %v50
  %93 = vmatpush.msra.mxu0 %v48
  %94 = vmatpush.msra.mxu0 %v46
  %95 = vmatpush.msra.mxu0 %v44
  %96 = vmatpush.msra.mxu0 %v42
  %97 = vmatpush.msra.mxu0 %v40
  %98 = vmatpush.msra.mxu0 %v38
  %99 = vmatpush.msra.mxu0 %v36
  %100 = vmatpush.msra.mxu0 %v34
  %101 = vmatpush.msra.mxu0 %v32
  %102 = vmatpush.msra.mxu0 %v30
  %103 = vmatpush.msra.mxu0 %v28
  %104 = vmatpush.msra.mxu0 %v26
  %105 = vmatpush.msra.mxu0 %v24
  %106 = vmatpush.msra.mxu0 %v22
  %107 = vmatpush.msra.mxu0 %v20
  %108 = vmatmul.f32.gmra.mxu0 %v86
  %v109 = vpop.f32.mrf.mxu0
  %v110 = vadd.f32 %v88, %v109
  %111 = vdwg.mxu0
  %112 = vmatpush.msra.mxu0 %v51
  %113 = vmatpush.msra.mxu0 %v49
  %114 = vmatpush.msra.mxu0 %v47
  %115 = vmatpush.msra.mxu0 %v45
  %116 = vmatpush.msra.mxu0 %v43
  %117 = vmatpush.msra.mxu0 %v41
  %118 = vmatpush.msra.mxu0 %v39
  %119 = vmatpush.msra.mxu0 %v37
  %120 = vmatpush.msra.mxu0 %v35
  %121 = vmatpush.msra.mxu0 %v33
  %122 = vmatpush.msra.mxu0 %v31
  %123 = vmatpush.msra.mxu0 %v29
  %124 = vmatpush.msra.mxu0 %v27
  %125 = vmatpush.msra.mxu0 %v25
  %126 = vmatpush.msra.mxu0 %v23
  %127 = vmatpush.msra.mxu0 %v21
  %128 = vmatmul.f32.gmra.mxu0 %v86
  %v129 = vpop.f32.mrf.mxu0
  %v130 = vadd.f32 %v89, %v129
  %131 = vdwg.mxu0
  %v132 = vxor.u32 %v110, 2147483648
  %v133 = vxor.u32 %v130, 2147483648
  %v134 = vmul.f32 %v132, 1.442695
  %v135 = vpow.pop %v134
  %v136 = vmul.f32 %v133, 1.442695
  %v137 = vpow.pop %v136
  %v138 = vadd.f32 %v135, 1.0
  %v139 = vadd.f32 %v137, 1.0
  %v140 = vrcp.pop %v138
  %v141 = vmul.f32 %v138, %v140
  %v142 = vsub.f32 1.0, %v141
  %v143 = vmul.f32 %v140, %v142
  %v144 = vadd.f32 %v140, %v143
  %vm145 = vweird.f32 %v138
  %vm146 = vweird.f32 %v140
  %vm147 = vmor %vm145, %vm146
  %v148 = vsel %vm147, %v140, %v144
  %v149 = vand.u32 2147483647, %v138
  %vm150 = vcmp.eq.f32.partialorder %v149, 8.507059e+37
  %v151 = vand.u32 %v138, 2147483648
  %v152 = vor.u32 1.1754944e-38, %v151
  %v153 = vsel %vm150, %v152, %v148
  %v154 = vmul.f32 1.0, %v153
  %v155 = vrcp.pop %v139
  %v156 = vmul.f32 %v139, %v155
  %v157 = vsub.f32 1.0, %v156
  %v158 = vmul.f32 %v155, %v157
  %v159 = vadd.f32 %v155, %v158
  %vm160 = vweird.f32 %v139
  %vm161 = vweird.f32 %v155
  %vm162 = vmor %vm160, %vm161
  %v163 = vsel %vm162, %v155, %v159
  %v164 = vand.u32 2147483647, %v139
  %vm165 = vcmp.eq.f32.partialorder %v164, 8.507059e+37
  %v166 = vand.u32 %v139, 2147483648
  %v167 = vor.u32 1.1754944e-38, %v166
  %v168 = vsel %vm165, %v167, %v163
  %v169 = vmul.f32 1.0, %v168
  %v170 = vmul.f32 %v110, %v154
  %v171 = vmul.f32 %v130, %v169
  %v173 = vperm.slane %v85, 0
  %175 = vmatpush.msra.mxu0 %v68
  %176 = vmatpush.msra.mxu0 %v67
  %177 = vmatpush.msra.mxu0 %v66
  %178 = vmatpush.msra.mxu0 %v65
  %179 = vmatpush.msra.mxu0 %v64
  %180 = vmatpush.msra.mxu0 %v63
  %181 = vmatpush.msra.mxu0 %v62
  %182 = vmatpush.msra.mxu0 %v61
  %183 = vmatpush.msra.mxu0 %v60
  %184 = vmatpush.msra.mxu0 %v59
  %185 = vmatpush.msra.mxu0 %v58
  %186 = vmatpush.msra.mxu0 %v57
  %187 = vmatpush.msra.mxu0 %v56
  %188 = vmatpush.msra.mxu0 %v55
  %189 = vmatpush.msra.mxu0 %v54
  %190 = vmatpush.msra.mxu0 %v53
  %191 = vmatmul.f32.gmra.mxu0 %v170
  %v192 = vpop.f32.mrf.mxu0
  %v193 = vadd.f32 %v173, %v192
  %194 = vdwg.mxu0
  %195 = vmatpush.msra.mxu0 %v84
  %196 = vmatpush.msra.mxu0 %v83
  %197 = vmatpush.msra.mxu0 %v82
  %198 = vmatpush.msra.mxu0 %v81
  %199 = vmatpush.msra.mxu0 %v80
  %200 = vmatpush.msra.mxu0 %v79
  %201 = vmatpush.msra.mxu0 %v78
  %202 = vmatpush.msra.mxu0 %v77
  %203 = vmatpush.msra.mxu0 %v76
  %204 = vmatpush.msra.mxu0 %v75
  %205 = vmatpush.msra.mxu0 %v74
  %206 = vmatpush.msra.mxu0 %v73
  %207 = vmatpush.msra.mxu0 %v72
  %208 = vmatpush.msra.mxu0 %v71
  %209 = vmatpush.msra.mxu0 %v70
  %210 = vmatpush.msra.mxu0 %v69
  %211 = vmatmul.f32.gmra.mxu0 %v171
  %v212 = vpop.f32.mrf.mxu0
  %v213 = vadd.f32 %v193, %v212
  %214 = vdwg.mxu0
  %vm215 = vcmask 64512
  %216 = vst.msk [vmem:[%s5] sm:$0xff] %vm215, %v213
  // Predicated region
  $region22: #{fused_readout_pallas.1} parent=0 // pred_check
    _
  $region23: #{fused_readout_pallas.1} parent=0 // pred_check_branch
    %218 = sbr.rel (0) target = $region25
  $region24: #{fused_readout_pallas.1} parent=0 // pred_region
    _
  $region25: #{fused_readout_pallas.1} parent=0 // pred_fallthru
    _
  // Predicated region
  $region26: #{fused_readout_pallas.1} parent=0 // pred_check
    _
  $region27: #{fused_readout_pallas.1} parent=0 // pred_check_branch
    %220 = sbr.rel (0) target = $region29
  $region28: #{fused_readout_pallas.1} parent=0 // pred_region
    _
  $region29: #{fused_readout_pallas.1} parent=0 // pred_fallthru
    _

</llo_original>
